<compile_context>
chip_gen: v7x
topology: tpu7x:2x2x1
jax: 0.10.0
libtpu: 0.0.40
codegen_flags: <defaults>
</compile_context>

<pallas_src>
import numpy as np
import jax
import jax.numpy as jnp
from jax.experimental import pallas as pl
from jax.experimental.pallas import tpu as pltpu

# ---- encoder config (small, deterministic) ----------------------------------
CIN = 3            # input channels (RGB, per docstring)
H = W = 16         # spatial size
H_PAD = H + 2      # zero-padded rows
W_PAD = W + 2      # zero-padded cols
COUT = 32          # conv output channels
EMB = 128          # embedding dim (per docstring: 128-dimensional embeddings)
KH = KW = 3        # conv kernel
HW = H * W
KP = 64            # padded lane width of one flattened padded row (>= W_PAD*CIN = 54)
BIAS_LANE = W_PAD * CIN   # lane 54: held at constant 1.0 -> carries b1 through the MXU


def _encoder_kernel(x3_ref, wstack_ref, wproj_ref, b2_ref, out_ref):
    # x3_ref:     (bt, H, KH*KP)      pre-shifted padded rows (lane 54 of each slab = 1.0)
    # wstack_ref: (KH*KP, W*COUT)     stacked block-structured conv weight (+ b1 in row 54)
    # wproj_ref:  (W*COUT, EMB)       (mean-pool over x) + Linear folded: tile(w2)/HW
    # b2_ref:     (1, EMB)
    # out_ref:    (bt, EMB)
    bt = x3_ref.shape[0]
    rows = bt * H

    x3 = x3_ref[...].reshape(rows, KH * KP)
    # 3x3 conv + bias as ONE MXU matmul (K = 192), f32 accumulation, then ReLU.
    h = jnp.maximum(
        jnp.dot(x3, wstack_ref[...], preferred_element_type=jnp.float32), 0.0)
    # Mean-pool over x + final Linear, folded into one matmul.
    proj = jnp.dot(h.astype(wproj_ref.dtype), wproj_ref[...],
                   preferred_element_type=jnp.float32)            # (rows, EMB)
    # Pool over y: sum groups of H consecutive rows (per image), add bias.
    emb = jnp.sum(proj.reshape(bt, H, EMB), axis=1) + b2_ref[...]  # (bt, EMB)
    out_ref[...] = emb.astype(out_ref.dtype)


def build_encoder_params(w1, b1, w2, b2, dtype=jnp.float32):
    """One-time weight preparation (hoisted out of the per-call forward path).

    w1: (KH, KW, CIN, COUT), b1: (COUT,), w2: (COUT, EMB), b2: (EMB,)
    Returns (wstack, wproj, b2_row).
    """
    # One-hot selection: sel[kp, xo, j*CIN + c] = 1 iff kp == (xo + j)*CIN + c.
    sel = np.zeros((KP, W, KW * CIN), np.float32)
    for xo in range(W):
        for j in range(KW):
            for c in range(CIN):
                sel[(xo + j) * CIN + c, xo, j * CIN + c] = 1.0
    sel = jnp.asarray(sel)

    # wstack[i*KP + kp, xo*COUT + co] = w1[i, j, c, co]  with kp = (xo+j)*CIN + c.
    w1r = w1.astype(jnp.float32).reshape(KH, KW * CIN, COUT)
    wstack = jnp.einsum('pxj,ijo->ipxo', sel, w1r).reshape(KH * KP, W * COUT)
    # Fold conv bias: image lane BIAS_LANE is constant 1.0; only slab 0 carries b1.
    wstack = wstack.at[BIAS_LANE].set(jnp.tile(b1.astype(jnp.float32), W))

    # Mean-pool over x + Linear folded into one (W*COUT, EMB) matrix.
    wproj = jnp.tile(w2.astype(jnp.float32), (W, 1)) / float(HW)
    b2_row = b2.astype(jnp.float32).reshape(1, EMB)
    return wstack.astype(dtype), wproj.astype(dtype), b2_row


def _choose_batch_tile(B):
    # >= 8 (sublane-aligned (bt, 128) output tile); grow for larger batches to
    # amortize per-step overhead, but keep >= 2 grid steps so both v7x
    # TensorCores get work under dimension_semantics=("parallel",).
    bt = 8
    while bt * 4 <= B and bt < 64:
        bt *= 2
    return bt


def siamese_encoder_forward(x_nchw, wstack, wproj, b2_row):
    """x_nchw: (B, CIN, H, W) float32 -> (B, EMB) float32 embeddings."""
    B = x_nchw.shape[0]
    dtype = wstack.dtype

    # --- light per-call input prep: NHWC, zero-pad, bias lane, row-shift -----
    x = jnp.transpose(x_nchw, (0, 2, 3, 1)).astype(dtype)         # (B, H, W, CIN)
    xp = jnp.pad(x, ((0, 0), (1, 1), (1, 1), (0, 0)))             # (B, H_PAD, W_PAD, CIN)
    xp = xp.reshape(B, H_PAD, W_PAD * CIN)                        # lane = x'*CIN + c
    xp = jnp.concatenate(
        [xp,
         jnp.ones((B, H_PAD, 1), dtype),                          # bias lane = 1.0
         jnp.zeros((B, H_PAD, KP - W_PAD * CIN - 1), dtype)],
        axis=-1)                                                  # (B, H_PAD, KP)
    # Pre-shifted rows: x3[:, y, i*KP:(i+1)*KP] = xp[:, y+i, :]  (i = 0..KH-1)
    x3 = jnp.concatenate([xp[:, i:i + H, :] for i in range(KH)], axis=-1)  # (B, H, KH*KP)

    bt = _choose_batch_tile(B)
    Bp = ((B + bt - 1) // bt) * bt
    if Bp != B:
        x3 = jnp.pad(x3, ((0, Bp - B), (0, 0), (0, 0)))
    n_steps = Bp // bt

    flops = 2 * Bp * H * (KH * KP * W * COUT + W * COUT * EMB)
    bytes_accessed = int(x3.size * x3.dtype.itemsize
                         + wstack.size * wstack.dtype.itemsize
                         + wproj.size * wproj.dtype.itemsize
                         + b2_row.size * 4 + Bp * EMB * 4)

    out = pl.pallas_call(
        _encoder_kernel,
        out_shape=jax.ShapeDtypeStruct((Bp, EMB), jnp.float32),
        grid_spec=pltpu.PrefetchScalarGridSpec(
            num_scalar_prefetch=0,
            grid=(n_steps,),
            in_specs=[
                pl.BlockSpec((bt, H, KH * KP), lambda b: (b, 0, 0)),
                pl.BlockSpec((KH * KP, W * COUT), lambda b: (0, 0)),
                pl.BlockSpec((W * COUT, EMB), lambda b: (0, 0)),
                pl.BlockSpec((1, EMB), lambda b: (0, 0)),
            ],
            out_specs=pl.BlockSpec((bt, EMB), lambda b: (b, 0)),
        ),
        compiler_params=pltpu.CompilerParams(
            dimension_semantics=("parallel",)),
        cost_estimate=pl.CostEstimate(
            flops=flops, transcendentals=0, bytes_accessed=bytes_accessed),
    )(x3, wstack, wproj, b2_row)
    return out[:B]


def _reference_forward(x_nchw, w1, b1, w2, b2):
    """Pure-JAX reference (same math, no Pallas)."""
    x = jnp.transpose(x_nchw, (0, 2, 3, 1))                        # NHWC
    h = jax.lax.conv_general_dilated(
        x, w1, window_strides=(1, 1), padding="SAME",
        dimension_numbers=("NHWC", "HWIO", "NHWC"),
        precision=jax.lax.Precision.HIGHEST)
    h = jnp.maximum(h + b1[None, None, None, :], 0.0)
    pooled = jnp.mean(h, axis=(1, 2))                              # (B, COUT)
    return jnp.dot(pooled, w2, precision=jax.lax.Precision.HIGHEST) + b2[None, :]


if __name__ == "__main__":
    key = jax.random.PRNGKey(0)
    k_x, k_w1, k_b1, k_w2, k_b2 = jax.random.split(key, 5)

    # batch = 16 -> two grid steps of bt = 8 (both v7x TensorCores get work)
    B = 16
    x = jax.random.normal(k_x, (B, CIN, H, W), dtype=jnp.float32)

    # deterministic synthetic encoder parameters
    # TODO(synk): the real module wraps an arbitrary user-supplied `encoder`;
    # this concrete conv->ReLU->pool->linear encoder stands in for it.
    w1 = 0.1 * jax.random.normal(k_w1, (KH, KW, CIN, COUT), dtype=jnp.float32)
    b1 = 0.1 * jax.random.normal(k_b1, (COUT,), dtype=jnp.float32)
    w2 = 0.1 * jax.random.normal(k_w2, (COUT, EMB), dtype=jnp.float32)
    b2 = 0.1 * jax.random.normal(k_b2, (EMB,), dtype=jnp.float32)

    # One-time weight prep (hoisted out of the per-call forward).  On v6e/v7x,
    # pass dtype=jnp.bfloat16 for the bf16-input / f32-accumulate MXU path.
    wstack, wproj, b2_row = build_encoder_params(w1, b1, w2, b2, dtype=jnp.float32)

    fwd = jax.jit(siamese_encoder_forward)
    out = jax.block_until_ready(fwd(x, wstack, wproj, b2_row))

    ref = _reference_forward(x, w1, b1, w2, b2)
    assert out.shape == (B, EMB)
    max_err = float(jnp.max(jnp.abs(out - ref)))
    assert jnp.allclose(out, ref, atol=1e-3, rtol=1e-3), max_err

    print("KERNEL_OK")
</pallas_src>

<mosaic_0001>
module attributes {stable_mosaic.version = 11 : i64} {
  func.func @_encoder_kernel(%arg0: i32, %arg1: memref<8x16x192xf32, #tpu.memory_space<vmem>>, %arg2: memref<192x512xf32, #tpu.memory_space<vmem>>, %arg3: memref<512x128xf32, #tpu.memory_space<vmem>>, %arg4: memref<1x128xf32, #tpu.memory_space<vmem>>, %arg5: memref<8x128xf32, #tpu.memory_space<vmem>>) attributes {dimension_semantics = [#tpu.dimension_semantics<parallel>], iteration_bounds = array<i64: 2>, scalar_prefetch = 0 : i64, scratch_operands = 0 : i64, tpu.core_type = #tpu.core_type<tc>, window_params = [{transform_indices = @transform_0, window_bounds = array<i64: 8, 16, 192>}, {pipeline_mode = #tpu.pipeline_mode<synchronous>, transform_indices = @transform_1, window_bounds = array<i64: 192, 512>}, {pipeline_mode = #tpu.pipeline_mode<synchronous>, transform_indices = @transform_2, window_bounds = array<i64: 512, 128>}, {pipeline_mode = #tpu.pipeline_mode<synchronous>, transform_indices = @transform_3, window_bounds = array<i64: 1, 128>}, {transform_indices = @transform_4, window_bounds = array<i64: 8, 128>}]} {
    %c0 = arith.constant 0 : index
    %c0_0 = arith.constant 0 : index
    %c0_1 = arith.constant 0 : index
    %0 = vector.load %arg1[%c0, %c0_0, %c0_1] : memref<8x16x192xf32, #tpu.memory_space<vmem>>, vector<8x16x192xf32>
    %1 = vector.shape_cast %0 : vector<8x16x192xf32> to vector<128x192xf32>
    %c0_2 = arith.constant 0 : index
    %c0_3 = arith.constant 0 : index
    %2 = vector.load %arg2[%c0_2, %c0_3] : memref<192x512xf32, #tpu.memory_space<vmem>>, vector<192x512xf32>
    %cst = arith.constant dense<0.000000e+00> : vector<128x512xf32>
    %3 = tpu.matmul %1, %2, %cst {dimension_numbers = #tpu.dot_dimension_numbers<[1], [0], [0], [1], [0, 0, 1, 1], [], []>} : vector<128x192xf32>, vector<192x512xf32>, vector<128x512xf32> -> vector<128x512xf32>
    %cst_4 = arith.constant 0.000000e+00 : f32
    %4 = vector.broadcast %cst_4 : f32 to vector<128x512xf32>
    %5 = arith.maximumf %3, %4 : vector<128x512xf32>
    %c0_5 = arith.constant 0 : index
    %c0_6 = arith.constant 0 : index
    %6 = vector.load %arg3[%c0_5, %c0_6] : memref<512x128xf32, #tpu.memory_space<vmem>>, vector<512x128xf32>
    %cst_7 = arith.constant dense<0.000000e+00> : vector<128x128xf32>
    %7 = tpu.matmul %5, %6, %cst_7 {dimension_numbers = #tpu.dot_dimension_numbers<[1], [0], [0], [1], [0, 0, 1, 1], [], []>} : vector<128x512xf32>, vector<512x128xf32>, vector<128x128xf32> -> vector<128x128xf32>
    %8 = vector.shape_cast %7 : vector<128x128xf32> to vector<8x16x128xf32>
    %cst_8 = arith.constant dense<0.000000e+00> : vector<8x128xf32>
    %9 = vector.multi_reduction <add>, %8, %cst_8 [1] : vector<8x16x128xf32> to vector<8x128xf32>
    %c0_9 = arith.constant 0 : index
    %c0_10 = arith.constant 0 : index
    %10 = vector.load %arg4[%c0_9, %c0_10] : memref<1x128xf32, #tpu.memory_space<vmem>>, vector<1x128xf32>
    %11 = vector.broadcast %10 : vector<1x128xf32> to vector<8x128xf32>
    %12 = arith.addf %9, %11 : vector<8x128xf32>
    %c0_11 = arith.constant 0 : index
    %c0_12 = arith.constant 0 : index
    %13 = vector.load %arg5[%c0_11, %c0_12] : memref<8x128xf32, #tpu.memory_space<vmem>>, vector<8x128xf32>
    tpu.vector_store %arg5[%c0_11, %c0_12], %12 {strides = array<i32>} : memref<8x128xf32, #tpu.memory_space<vmem>>, vector<8x128xf32>,
    return
  }
  func.func @transform_0(%arg0: i32) -> (i32, i32, i32) {
    %c0_i32 = arith.constant 0 : i32
    %c0_i32_0 = arith.constant 0 : i32
    %c0_i32_1 = arith.constant 0 : i32
    return %arg0, %c0_i32, %c0_i32_0 : i32, i32, i32
  }
  func.func @transform_1(%arg0: i32) -> (i32, i32) {
    %c0_i32 = arith.constant 0 : i32
    %c0_i32_0 = arith.constant 0 : i32
    %c0_i32_1 = arith.constant 0 : i32
    return %c0_i32, %c0_i32_0 : i32, i32
  }
  func.func @transform_2(%arg0: i32) -> (i32, i32) {
    %c0_i32 = arith.constant 0 : i32
    %c0_i32_0 = arith.constant 0 : i32
    %c0_i32_1 = arith.constant 0 : i32
    return %c0_i32, %c0_i32_0 : i32, i32
  }
  func.func @transform_3(%arg0: i32) -> (i32, i32) {
    %c0_i32 = arith.constant 0 : i32
    %c0_i32_0 = arith.constant 0 : i32
    %c0_i32_1 = arith.constant 0 : i32
    return %c0_i32, %c0_i32_0 : i32, i32
  }
  func.func @transform_4(%arg0: i32) -> (i32, i32) {
    %c0_i32 = arith.constant 0 : i32
    %c0_i32_0 = arith.constant 0 : i32
    return %arg0, %c0_i32 : i32, i32
  }
}

</mosaic_0001>

<llo_original>
// kernel: siamese_encoder_forward.1
$region0: #{siamese_encoder_forward.1}
  #allocation0 [shape = 'u32[]', space=smem, size = 0x4, offset = 0x4, fixed_abs, tag = 'smem constant byte address 0x4 - core index']
  #allocation1 [shape = 'u32[144,128]{1,0:T(1,128)}', space=vmem, size = 0x12000, scoped, tag = 'internal scratch']
  %s0 = inlined_call_operand.vmem [shape: f32[16,16,192], index: 0, kind: input, shape index: {}]
  %s1 = inlined_call_operand.vmem [shape: f32[192,512], index: 1, kind: input, shape index: {}]
  %s2 = inlined_call_operand.vmem [shape: f32[512,128], index: 2, kind: input, shape index: {}]
  %s3 = inlined_call_operand.vmem [shape: f32[1,128], index: 3, kind: input, shape index: {}]
  %s4 = inlined_call_operand.hbm [shape: f32[16,128], index: 4, kind: output, shape index: {}]
  %s5 = sld [smem:[#allocation0]]
  $region49: #{siamese_encoder_forward.1} parent=0
    _
  %s7 = ssub.s32 1, %s5
  %s8 = scalar_select 0, %s7, %s5
  $region1: #{siamese_encoder_forward.1} parent=0
    #allocation2 [shape = 'u8[8192]{0}', space=vmem, size = 0x2000, scoped, tag = 'output window, operand 0']
    #allocation3 [shape = 's32[2]{0}', space=sflag, size = 0x8, scoped, tag = 'scoped memory for siamese_encoder_forward.1']
    %9 = vsyncpa [#allocation3], 0
    %s10 = scalar_lea.sflag [#allocation3], 1
    %11 = vsyncpa %s10, 0
    loop: start=0, step=1, limit=4
    $region2: #{siamese_encoder_forward.1} parent=1 // loop_pre_header
      _
    $region3: #{siamese_encoder_forward.1} parent=1 // loop_header
      %s13 = sphi 0, %s17
      %p14 = scmp.ge.s32.totalorder %s13, 4
      %s23 = sphi 0, %s25
      %s26 = sphi 0, %s23
      %s27 = sphi 0, %s26
      %s43 = sphi 0, %s27
      %s47 = sphi 0, %s47
      %s49 = sphi 0, %s47
      %s50 = sphi 0, %s49
      %s64 = sphi 0, %s50
      %s68 = sphi 0, %s68
      %s70 = sphi 0, %s68
      %s71 = sphi 0, %s70
      %s85 = sphi 0, %s71
      %s89 = sphi 0, %s89
      %s91 = sphi 0, %s89
      %s92 = sphi 0, %s91
      %s106 = sphi 0, %s92
      %s112 = sphi 0, %s114
      %s115 = sphi 0, %s112
      %s116 = sphi 0, %s115
      %s132 = sphi 0, %s116
    $region4: #{siamese_encoder_forward.1} parent=1 // loop_header_branch
      %16 = sbr.rel (%p14) target = $region8
    $region5: #{siamese_encoder_forward.1} parent=1 // loop_body
      %s18 = ssub.s32 %s13, 1
      %s19 = ssub.s32 %s13, 2
      %s20 = sadd.s32 %s13, 1
      %s21 = ssub.s32 %s13, %s20
      %p22 = scmp.eq.s32.totalorder %s21, 0
      %s24 = sadd.s32 %s23, 1
      %s25 = scalar_select %p22, %s23, %s24
      %p28 = pneg %p22
      %p29 = scmp.eq.s32.totalorder %s13, 1
      %p30 = por %p28, %p29
      %p31 = scmp.ne.s32.totalorder %s23, %s26
      %p32 = scmp.eq.s32.totalorder %s13, 0
      %p33 = por %p31, %p32
      %p34 = scmp.ne.s32.totalorder %s23, %s26
      %p35 = scmp.eq.s32.totalorder %s18, 1
      %p36 = por %p34, %p35
      %p37 = scmp.ne.s32.totalorder %s26, %s27
      %p38 = scmp.eq.s32.totalorder %s18, 0
      %p39 = por %p37, %p38
      %p40 = scmp.ne.s32.totalorder %s26, %s27
      %p41 = scmp.eq.s32.totalorder %s19, 1
      %p42 = por %p40, %p41
      %p44 = scmp.ne.s32.totalorder %s27, %s43
      %p45 = scmp.eq.s32.totalorder %s19, 0
      %p46 = por %p44, %p45
      %s48 = sadd.s32 %s47, 1
      %p51 = scmp.eq.s32.totalorder %s13, 1
      %p52 = scmp.ne.s32.totalorder %s47, %s49
      %p53 = scmp.eq.s32.totalorder %s13, 0
      %p54 = por %p52, %p53
      %p55 = scmp.ne.s32.totalorder %s47, %s49
      %p56 = scmp.eq.s32.totalorder %s18, 1
      %p57 = por %p55, %p56
      %p58 = scmp.ne.s32.totalorder %s49, %s50
      %p59 = scmp.eq.s32.totalorder %s18, 0
      %p60 = por %p58, %p59
      %p61 = scmp.ne.s32.totalorder %s49, %s50
      %p62 = scmp.eq.s32.totalorder %s19, 1
      %p63 = por %p61, %p62
      %p65 = scmp.ne.s32.totalorder %s50, %s64
      %p66 = scmp.eq.s32.totalorder %s19, 0
      %p67 = por %p65, %p66
      %s69 = sadd.s32 %s68, 1
      %p72 = scmp.eq.s32.totalorder %s13, 1
      %p73 = scmp.ne.s32.totalorder %s68, %s70
      %p74 = scmp.eq.s32.totalorder %s13, 0
      %p75 = por %p73, %p74
      %p76 = scmp.ne.s32.totalorder %s68, %s70
      %p77 = scmp.eq.s32.totalorder %s18, 1
      %p78 = por %p76, %p77
      %p79 = scmp.ne.s32.totalorder %s70, %s71
      %p80 = scmp.eq.s32.totalorder %s18, 0
      %p81 = por %p79, %p80
      %p82 = scmp.ne.s32.totalorder %s70, %s71
      %p83 = scmp.eq.s32.totalorder %s19, 1
      %p84 = por %p82, %p83
      %p86 = scmp.ne.s32.totalorder %s71, %s85
      %p87 = scmp.eq.s32.totalorder %s19, 0
      %p88 = por %p86, %p87
      %s90 = sadd.s32 %s89, 1
      %p93 = scmp.eq.s32.totalorder %s13, 1
      %p94 = scmp.ne.s32.totalorder %s89, %s91
      %p95 = scmp.eq.s32.totalorder %s13, 0
      %p96 = por %p94, %p95
      %p97 = scmp.ne.s32.totalorder %s89, %s91
      %p98 = scmp.eq.s32.totalorder %s18, 1
      %p99 = por %p97, %p98
      %p100 = scmp.ne.s32.totalorder %s91, %s92
      %p101 = scmp.eq.s32.totalorder %s18, 0
      %p102 = por %p100, %p101
      %p103 = scmp.ne.s32.totalorder %s91, %s92
      %p104 = scmp.eq.s32.totalorder %s19, 1
      %p105 = por %p103, %p104
      %p107 = scmp.ne.s32.totalorder %s92, %s106
      %p108 = scmp.eq.s32.totalorder %s19, 0
      %p109 = por %p107, %p108
      %s110 = ssub.s32 %s13, %s20
      %p111 = scmp.eq.s32.totalorder %s110, 0
      %s113 = sadd.s32 %s112, 1
      %s114 = scalar_select %p111, %s112, %s113
      %p117 = pneg %p111
      %p118 = scmp.eq.s32.totalorder %s13, 1
      %p119 = por %p117, %p118
      %p120 = scmp.ne.s32.totalorder %s112, %s115
      %p121 = scmp.eq.s32.totalorder %s13, 0
      %p122 = por %p120, %p121
      %p123 = scmp.ne.s32.totalorder %s112, %s115
      %p124 = scmp.eq.s32.totalorder %s18, 1
      %p125 = por %p123, %p124
      %p126 = scmp.ne.s32.totalorder %s115, %s116
      %p127 = scmp.eq.s32.totalorder %s18, 0
      %p128 = por %p126, %p127
      %p129 = scmp.ne.s32.totalorder %s115, %s116
      %p130 = scmp.eq.s32.totalorder %s19, 1
      %p131 = por %p129, %p130
      %p133 = scmp.ne.s32.totalorder %s116, %s132
      %p134 = scmp.eq.s32.totalorder %s19, 0
      %p135 = por %p133, %p134
      %p136 = scmp.le.s32.totalorder 1, %s13
      %p137 = scmp.lt.s32.totalorder %s13, 3
      %p138 = pnand %p136, %p137
      %p139 = pneg %p138
      // Predicated region
      $region9: #{siamese_encoder_forward.1} parent=5 // pred_check
        _
      $region10: #{siamese_encoder_forward.1} parent=5 // pred_check_branch
        %141 = sbr.rel (%p138) target = $region12
      $region11: #{siamese_encoder_forward.1} parent=5 // pred_region
        %s142 = ssub.s32 %s13, 1
        // Predicated region
        $region13: #{siamese_encoder_forward.1} parent=11 // pred_check
          %p143 = pneg %p60
        $region14: #{siamese_encoder_forward.1} parent=11 // pred_check_branch
          %145 = sbr.rel (%p143) target = $region16
        $region15: #{siamese_encoder_forward.1} parent=11 // pred_region
          _
        $region16: #{siamese_encoder_forward.1} parent=11 // pred_fallthru
          _
        // Predicated region
        $region17: #{siamese_encoder_forward.1} parent=11 // pred_check
          %p146 = pneg %p81
        $region18: #{siamese_encoder_forward.1} parent=11 // pred_check_branch
          %148 = sbr.rel (%p146) target = $region20
        $region19: #{siamese_encoder_forward.1} parent=11 // pred_region
          _
        $region20: #{siamese_encoder_forward.1} parent=11 // pred_fallthru
          _
        // Predicated region
        $region21: #{siamese_encoder_forward.1} parent=11 // pred_check
          %p149 = pneg %p102
        $region22: #{siamese_encoder_forward.1} parent=11 // pred_check_branch
          %151 = sbr.rel (%p149) target = $region24
        $region23: #{siamese_encoder_forward.1} parent=11 // pred_region
          _
        $region24: #{siamese_encoder_forward.1} parent=11 // pred_fallthru
          _
      $region12: #{siamese_encoder_forward.1} parent=5 // pred_fallthru
        _
      %p152 = scmp.lt.s32.totalorder %s13, 2
      // Predicated region
      $region25: #{siamese_encoder_forward.1} parent=5 // pred_check
        %p153 = pneg %p152
      $region26: #{siamese_encoder_forward.1} parent=5 // pred_check_branch
        %155 = sbr.rel (%p153) target = $region28
      $region27: #{siamese_encoder_forward.1} parent=5 // pred_region
        // Predicated region
        $region29: #{siamese_encoder_forward.1} parent=27 // pred_check
          %p156 = pneg %p33
        $region30: #{siamese_encoder_forward.1} parent=27 // pred_check_branch
          %158 = sbr.rel (%p156) target = $region32
        $region31: #{siamese_encoder_forward.1} parent=27 // pred_region
          %s159 = smul.u32 8, %s13
          %p160 = scmp.lt.s32.totalorder %s159, 15
          %s161 = scalar_select %p160, %s159, 15
          %s162 = smul.addr %s161, 4
          %s163 = smul.addr %s162, 8
          %s164 = scalar_lea.vmem %s0, %s163
          %s165 = smul.u32 8, %s13
        $region32: #{siamese_encoder_forward.1} parent=27 // pred_fallthru
          _
      $region28: #{siamese_encoder_forward.1} parent=5 // pred_fallthru
        _
      %p166 = scmp.le.s32.totalorder 1, %s13
      %p167 = scmp.lt.s32.totalorder %s13, 3
      %p168 = pnand %p166, %p167
      %p169 = pneg %p168
      // Predicated region
      $region33: #{siamese_encoder_forward.1} parent=5 // pred_check
        _
      $region34: #{siamese_encoder_forward.1} parent=5 // pred_check_branch
        %171 = sbr.rel (%p168) target = $region36
      $region35: #{siamese_encoder_forward.1} parent=5 // pred_region
        %s172 = ssub.s32 %s13, 1
        %s173 = smul.u32 8, %s18
        %p174 = scmp.lt.s32.totalorder %s173, 15
        %s175 = scalar_select %p174, %s173, 15
        %s176 = smul.addr %s175, 4
        %s177 = smul.addr %s176, 8
        %s178 = scalar_lea.vmem %s0, %s177
        %p179 = pneg %p39
        %p180 = pneg %p36
        %p181 = pneg %p60
        %p182 = pneg %p57
        %p183 = pneg %p81
        %p184 = pneg %p78
        %p185 = pneg %p102
        %p186 = pneg %p99
        %p187 = pneg %p128
        %p188 = pneg %p125
        %s189 = sand.u32 %s115, 1
        %s190 = scalar_lea.sflag [#allocation3], %s189
        %s191 = sand.u32 %s115, 1
        %s192 = smul.addr %s191, 8
        %s193 = scalar_lea.vmem [#allocation2], %s192
        %s194 = smul.u32 8, %s18
        %p195 = scmp.lt.s32.totalorder %s194, 15
        %s196 = scalar_select %p195, %s194, 15
        %s197 = smul.addr %s196, 4
        %s198 = smul.addr %s197, 8
        %s199 = scalar_lea.vmem %s0, %s198
        %s200 = smul.u32 8, %s18
        %v201 = vld [vmem:[%s199] sm:$0xff]
        %v202 = vld [vmem:[%s199 + $0x8] sm:$0xff]
        %v203 = vld [vmem:[%s199 + $0x10] sm:$0xff]
        %v204 = vld [vmem:[%s199 + $0x18] sm:$0xff]
        %v205 = vld [vmem:[%s199 + $0x20] sm:$0xff]
        %v206 = vld [vmem:[%s199 + $0x28] sm:$0xff]
        %v207 = vld [vmem:[%s199 + $0x30] sm:$0xff]
        %v208 = vld [vmem:[%s199 + $0x38] sm:$0xff]
        %v209 = vld [vmem:[%s199 + $0x40] sm:$0xff]
        %v210 = vld [vmem:[%s199 + $0x48] sm:$0xff]
        %v211 = vld [vmem:[%s199 + $0x50] sm:$0xff]
        %v212 = vld [vmem:[%s199 + $0x58] sm:$0xff]
        %v213 = vld [vmem:[%s199 + $0x60] sm:$0xff]
        %v214 = vld [vmem:[%s199 + $0x68] sm:$0xff]
        %v215 = vld [vmem:[%s199 + $0x70] sm:$0xff]
        %v216 = vld [vmem:[%s199 + $0x78] sm:$0xff]
        %v217 = vld [vmem:[%s199 + $0x80] sm:$0xff]
        %v218 = vld [vmem:[%s199 + $0x88] sm:$0xff]
        %v219 = vld [vmem:[%s199 + $0x90] sm:$0xff]
        %v220 = vld [vmem:[%s199 + $0x98] sm:$0xff]
        %v221 = vld [vmem:[%s199 + $0xa0] sm:$0xff]
        %v222 = vld [vmem:[%s199 + $0xa8] sm:$0xff]
        %v223 = vld [vmem:[%s199 + $0xb0] sm:$0xff]
        %v224 = vld [vmem:[%s199 + $0xb8] sm:$0xff]
        %v225 = vld [vmem:[%s199 + $0xc0] sm:$0xff]
        %v226 = vld [vmem:[%s199 + $0xc8] sm:$0xff]
        %v227 = vld [vmem:[%s199 + $0xd0] sm:$0xff]
        %v228 = vld [vmem:[%s199 + $0xd8] sm:$0xff]
        %v229 = vld [vmem:[%s199 + $0xe0] sm:$0xff]
        %v230 = vld [vmem:[%s199 + $0xe8] sm:$0xff]
        %v231 = vld [vmem:[%s199 + $0xf0] sm:$0xff]
        %v232 = vld [vmem:[%s199 + $0xf8] sm:$0xff]
        %v233 = vld [vmem:[%s1] sm:$0xff]
        %v234 = vld [vmem:[%s1 + $0x8] sm:$0xff]
        %v235 = vld [vmem:[%s1 + $0x10] sm:$0xff]
        %v236 = vld [vmem:[%s1 + $0x18] sm:$0xff]
        %v237 = vld [vmem:[%s1 + $0x20] sm:$0xff]
        %v238 = vld [vmem:[%s1 + $0x28] sm:$0xff]
        %v239 = vld [vmem:[%s1 + $0x30] sm:$0xff]
        %v240 = vld [vmem:[%s1 + $0x38] sm:$0xff]
        %v241 = vld [vmem:[%s1 + $0x40] sm:$0xff]
        %v242 = vld [vmem:[%s1 + $0x48] sm:$0xff]
        %v243 = vld [vmem:[%s1 + $0x50] sm:$0xff]
        %v244 = vld [vmem:[%s1 + $0x58] sm:$0xff]
        %v245 = vld [vmem:[%s1 + $0x60] sm:$0xff]
        %v246 = vld [vmem:[%s1 + $0x68] sm:$0xff]
        %v247 = vld [vmem:[%s1 + $0x70] sm:$0xff]
        %v248 = vld [vmem:[%s1 + $0x78] sm:$0xff]
        %v249 = vld [vmem:[%s1 + $0x80] sm:$0xff]
        %v250 = vld [vmem:[%s1 + $0x88] sm:$0xff]
        %v251 = vld [vmem:[%s1 + $0x90] sm:$0xff]
        %v252 = vld [vmem:[%s1 + $0x98] sm:$0xff]
        %v253 = vld [vmem:[%s1 + $0xa0] sm:$0xff]
        %v254 = vld [vmem:[%s1 + $0xa8] sm:$0xff]
        %v255 = vld [vmem:[%s1 + $0xb0] sm:$0xff]
        %v256 = vld [vmem:[%s1 + $0xb8] sm:$0xff]
        %v257 = vld [vmem:[%s1 + $0xc0] sm:$0xff]
        %v258 = vld [vmem:[%s1 + $0xc8] sm:$0xff]
        %v259 = vld [vmem:[%s1 + $0xd0] sm:$0xff]
        %v260 = vld [vmem:[%s1 + $0xd8] sm:$0xff]
        %v261 = vld [vmem:[%s1 + $0xe0] sm:$0xff]
        %v262 = vld [vmem:[%s1 + $0xe8] sm:$0xff]
        %v263 = vld [vmem:[%s1 + $0xf0] sm:$0xff]
        %v264 = vld [vmem:[%s1 + $0xf8] sm:$0xff]
        %v265 = vld [vmem:[%s1 + $0x100] sm:$0xff]
        %v266 = vld [vmem:[%s1 + $0x108] sm:$0xff]
        %v267 = vld [vmem:[%s1 + $0x110] sm:$0xff]
        %v268 = vld [vmem:[%s1 + $0x118] sm:$0xff]
        %v269 = vld [vmem:[%s1 + $0x120] sm:$0xff]
        %v270 = vld [vmem:[%s1 + $0x128] sm:$0xff]
        %v271 = vld [vmem:[%s1 + $0x130] sm:$0xff]
        %v272 = vld [vmem:[%s1 + $0x138] sm:$0xff]
        %v273 = vld [vmem:[%s1 + $0x140] sm:$0xff]
        %v274 = vld [vmem:[%s1 + $0x148] sm:$0xff]
        %v275 = vld [vmem:[%s1 + $0x150] sm:$0xff]
        %v276 = vld [vmem:[%s1 + $0x158] sm:$0xff]
        %v277 = vld [vmem:[%s1 + $0x160] sm:$0xff]
        %v278 = vld [vmem:[%s1 + $0x168] sm:$0xff]
        %v279 = vld [vmem:[%s1 + $0x170] sm:$0xff]
        %v280 = vld [vmem:[%s1 + $0x178] sm:$0xff]
        %v281 = vld [vmem:[%s1 + $0x180] sm:$0xff]
        %v282 = vld [vmem:[%s1 + $0x188] sm:$0xff]
        %v283 = vld [vmem:[%s1 + $0x190] sm:$0xff]
        %v284 = vld [vmem:[%s1 + $0x198] sm:$0xff]
        %v285 = vld [vmem:[%s1 + $0x1a0] sm:$0xff]
        %v286 = vld [vmem:[%s1 + $0x1a8] sm:$0xff]
        %v287 = vld [vmem:[%s1 + $0x1b0] sm:$0xff]
        %v288 = vld [vmem:[%s1 + $0x1b8] sm:$0xff]
        %v289 = vld [vmem:[%s1 + $0x1c0] sm:$0xff]
        %v290 = vld [vmem:[%s1 + $0x1c8] sm:$0xff]
        %v291 = vld [vmem:[%s1 + $0x1d0] sm:$0xff]
        %v292 = vld [vmem:[%s1 + $0x1d8] sm:$0xff]
        %v293 = vld [vmem:[%s1 + $0x1e0] sm:$0xff]
        %v294 = vld [vmem:[%s1 + $0x1e8] sm:$0xff]
        %v295 = vld [vmem:[%s1 + $0x1f0] sm:$0xff]
        %v296 = vld [vmem:[%s1 + $0x1f8] sm:$0xff]
        %v297 = vld [vmem:[%s1 + $0x200] sm:$0xff]
        %v298 = vld [vmem:[%s1 + $0x208] sm:$0xff]
        %v299 = vld [vmem:[%s1 + $0x210] sm:$0xff]
        %v300 = vld [vmem:[%s1 + $0x218] sm:$0xff]
        %v301 = vld [vmem:[%s1 + $0x220] sm:$0xff]
        %v302 = vld [vmem:[%s1 + $0x228] sm:$0xff]
        %v303 = vld [vmem:[%s1 + $0x230] sm:$0xff]
        %v304 = vld [vmem:[%s1 + $0x238] sm:$0xff]
        %v305 = vld [vmem:[%s1 + $0x240] sm:$0xff]
        %v306 = vld [vmem:[%s1 + $0x248] sm:$0xff]
        %v307 = vld [vmem:[%s1 + $0x250] sm:$0xff]
        %v308 = vld [vmem:[%s1 + $0x258] sm:$0xff]
        %v309 = vld [vmem:[%s1 + $0x260] sm:$0xff]
        %v310 = vld [vmem:[%s1 + $0x268] sm:$0xff]
        %v311 = vld [vmem:[%s1 + $0x270] sm:$0xff]
        %v312 = vld [vmem:[%s1 + $0x278] sm:$0xff]
        %v313 = vld [vmem:[%s1 + $0x280] sm:$0xff]
        %v314 = vld [vmem:[%s1 + $0x288] sm:$0xff]
        %v315 = vld [vmem:[%s1 + $0x290] sm:$0xff]
        %v316 = vld [vmem:[%s1 + $0x298] sm:$0xff]
        %v317 = vld [vmem:[%s1 + $0x2a0] sm:$0xff]
        %v318 = vld [vmem:[%s1 + $0x2a8] sm:$0xff]
        %v319 = vld [vmem:[%s1 + $0x2b0] sm:$0xff]
        %v320 = vld [vmem:[%s1 + $0x2b8] sm:$0xff]
        %v321 = vld [vmem:[%s1 + $0x2c0] sm:$0xff]
        %v322 = vld [vmem:[%s1 + $0x2c8] sm:$0xff]
        %v323 = vld [vmem:[%s1 + $0x2d0] sm:$0xff]
        %v324 = vld [vmem:[%s1 + $0x2d8] sm:$0xff]
        %v325 = vld [vmem:[%s1 + $0x2e0] sm:$0xff]
        %v326 = vld [vmem:[%s1 + $0x2e8] sm:$0xff]
        %v327 = vld [vmem:[%s1 + $0x2f0] sm:$0xff]
        %v328 = vld [vmem:[%s1 + $0x2f8] sm:$0xff]
        %vm329 = vcmask 523264
        %v331 = vsel %vm329, %v202, 0
        %v334 = vsel %vm329, %v204, 0
        %v337 = vsel %vm329, %v206, 0
        %v340 = vsel %vm329, %v208, 0
        %v343 = vsel %vm329, %v210, 0
        %v346 = vsel %vm329, %v212, 0
        %v349 = vsel %vm329, %v214, 0
        %v352 = vsel %vm329, %v216, 0
        %v355 = vsel %vm329, %v218, 0
        %v358 = vsel %vm329, %v220, 0
        %v361 = vsel %vm329, %v222, 0
        %v364 = vsel %vm329, %v224, 0
        %v367 = vsel %vm329, %v226, 0
        %v370 = vsel %vm329, %v228, 0
        %v373 = vsel %vm329, %v230, 0
        %v376 = vsel %vm329, %v232, 0
        %378 = vmatprep.subr.mxu0 %v234
        %379 = vmatpush1.msra.mxu0 %v233
        %380 = vmatprep.subr.mxu0 %v238
        %381 = vmatpush1.msra.mxu0 %v237
        %382 = vmatprep.subr.mxu0 %v242
        %383 = vmatpush1.msra.mxu0 %v241
        %384 = vmatprep.subr.mxu0 %v246
        %385 = vmatpush1.msra.mxu0 %v245
        %386 = vmatprep.subr.mxu0 %v250
        %387 = vmatpush1.msra.mxu0 %v249
        %388 = vmatprep.subr.mxu0 %v254
        %389 = vmatpush1.msra.mxu0 %v253
        %390 = vmatprep.subr.mxu0 %v258
        %391 = vmatpush1.msra.mxu0 %v257
        %392 = vmatprep.subr.mxu0 %v262
        %393 = vmatpush1.msra.mxu0 %v261
        %394 = vmatprep.subr.mxu0 %v266
        %395 = vmatpush1.msra.mxu0 %v265
        %396 = vmatprep.subr.mxu0 %v270
        %397 = vmatpush1.msra.mxu0 %v269
        %398 = vmatprep.subr.mxu0 %v274
        %399 = vmatpush1.msra.mxu0 %v273
        %400 = vmatprep.subr.mxu0 %v278
        %401 = vmatpush1.msra.mxu0 %v277
        %402 = vmatprep.subr.mxu0 %v282
        %403 = vmatpush1.msra.mxu0 %v281
        %404 = vmatprep.subr.mxu0 %v286
        %405 = vmatpush1.msra.mxu0 %v285
        %406 = vmatprep.subr.mxu0 %v290
        %407 = vmatpush1.msra.mxu0 %v289
        %408 = vmatprep.subr.mxu0 %v294
        %409 = vmatpush1.msra.mxu0 %v293
        %410 = vmatprep.subr.mxu0 %v298
        %411 = vmatpush1.msra.mxu0 %v297
        %412 = vmatprep.subr.mxu0 %v302
        %413 = vmatpush1.msra.mxu0 %v301
        %414 = vmatprep.subr.mxu0 %v306
        %415 = vmatpush1.msra.mxu0 %v305
        %416 = vmatprep.subr.mxu0 %v310
        %417 = vmatpush1.msra.mxu0 %v309
        %418 = vmatprep.subr.mxu0 %v314
        %419 = vmatpush1.msra.mxu0 %v313
        %420 = vmatprep.subr.mxu0 %v318
        %421 = vmatpush1.msra.mxu0 %v317
        %422 = vmatprep.subr.mxu0 %v322
        %423 = vmatpush1.msra.mxu0 %v321
        %424 = vmatprep.subr.mxu0 %v326
        %425 = vmatpush1.msra.mxu0 %v325
        %426 = vmatprep.subr.mxu0 0.0
        %427 = vmatpush1.msra.mxu0 0.0
        %428 = vmatprep.subr.mxu0 0.0
        %429 = vmatpush1.msra.mxu0 0.0
        %430 = vmatprep.subr.mxu0 0.0
        %431 = vmatpush1.msra.mxu0 0.0
        %432 = vmatprep.subr.mxu0 0.0
        %433 = vmatpush1.msra.mxu0 0.0
        %434 = vmatprep.subr.mxu0 0.0
        %435 = vmatpush1.msra.mxu0 0.0
        %436 = vmatprep.subr.mxu0 0.0
        %437 = vmatpush1.msra.mxu0 0.0
        %438 = vmatprep.subr.mxu0 0.0
        %439 = vmatpush1.msra.mxu0 0.0
        %440 = vmatprep.subr.mxu0 0.0
        %441 = vmatpush1.msra.mxu0 0.0
        %442 = vmatprep.mubr.f32.mxu0 %v331
        %443 = vmatmul.mubr.f32.gmra.mrb[0].mxu0 %v201
        %v444 = vpop.f32.mrb[0].mxu0
        %v445 = vadd.f32 0.0, %v444
        %v446 = vpop.f32.mrb[0].mxu0
        %v447 = vadd.f32 0.0, %v446
        %448 = vmatprep.mubr.f32.mxu0 %v334
        %449 = vmatmul.mubr.f32.gmra.mrb[0].mxu0 %v203
        %v450 = vpop.f32.mrb[0].mxu0
        %v451 = vadd.f32 0.0, %v450
        %v452 = vpop.f32.mrb[0].mxu0
        %v453 = vadd.f32 0.0, %v452
        %454 = vmatprep.mubr.f32.mxu0 %v337
        %455 = vmatmul.mubr.f32.gmra.mrb[0].mxu0 %v205
        %v456 = vpop.f32.mrb[0].mxu0
        %v457 = vadd.f32 0.0, %v456
        %v458 = vpop.f32.mrb[0].mxu0
        %v459 = vadd.f32 0.0, %v458
        %460 = vmatprep.mubr.f32.mxu0 %v340
        %461 = vmatmul.mubr.f32.gmra.mrb[0].mxu0 %v207
        %v462 = vpop.f32.mrb[0].mxu0
        %v463 = vadd.f32 0.0, %v462
        %v464 = vpop.f32.mrb[0].mxu0
        %v465 = vadd.f32 0.0, %v464
        %466 = vmatprep.mubr.f32.mxu0 %v343
        %467 = vmatmul.mubr.f32.gmra.mrb[0].mxu0 %v209
        %v468 = vpop.f32.mrb[0].mxu0
        %v469 = vadd.f32 0.0, %v468
        %v470 = vpop.f32.mrb[0].mxu0
        %v471 = vadd.f32 0.0, %v470
        %472 = vmatprep.mubr.f32.mxu0 %v346
        %473 = vmatmul.mubr.f32.gmra.mrb[0].mxu0 %v211
        %v474 = vpop.f32.mrb[0].mxu0
        %v475 = vadd.f32 0.0, %v474
        %v476 = vpop.f32.mrb[0].mxu0
        %v477 = vadd.f32 0.0, %v476
        %478 = vmatprep.mubr.f32.mxu0 %v349
        %479 = vmatmul.mubr.f32.gmra.mrb[0].mxu0 %v213
        %v480 = vpop.f32.mrb[0].mxu0
        %v481 = vadd.f32 0.0, %v480
        %v482 = vpop.f32.mrb[0].mxu0
        %v483 = vadd.f32 0.0, %v482
        %484 = vmatprep.mubr.f32.mxu0 %v352
        %485 = vmatmul.mubr.f32.gmra.mrb[0].mxu0 %v215
        %v486 = vpop.f32.mrb[0].mxu0
        %v487 = vadd.f32 0.0, %v486
        %v488 = vpop.f32.mrb[0].mxu0
        %v489 = vadd.f32 0.0, %v488
        %490 = vmatprep.mubr.f32.mxu0 %v355
        %491 = vmatmul.mubr.f32.gmra.mrb[0].mxu0 %v217
        %v492 = vpop.f32.mrb[0].mxu0
        %v493 = vadd.f32 0.0, %v492
        %v494 = vpop.f32.mrb[0].mxu0
        %v495 = vadd.f32 0.0, %v494
        %496 = vmatprep.mubr.f32.mxu0 %v358
        %497 = vmatmul.mubr.f32.gmra.mrb[0].mxu0 %v219
        %v498 = vpop.f32.mrb[0].mxu0
        %v499 = vadd.f32 0.0, %v498
        %v500 = vpop.f32.mrb[0].mxu0
        %v501 = vadd.f32 0.0, %v500
        %502 = vmatprep.mubr.f32.mxu0 %v361
        %503 = vmatmul.mubr.f32.gmra.mrb[0].mxu0 %v221
        %v504 = vpop.f32.mrb[0].mxu0
        %v505 = vadd.f32 0.0, %v504
        %v506 = vpop.f32.mrb[0].mxu0
        %v507 = vadd.f32 0.0, %v506
        %508 = vmatprep.mubr.f32.mxu0 %v364
        %509 = vmatmul.mubr.f32.gmra.mrb[0].mxu0 %v223
        %v510 = vpop.f32.mrb[0].mxu0
        %v511 = vadd.f32 0.0, %v510
        %v512 = vpop.f32.mrb[0].mxu0
        %v513 = vadd.f32 0.0, %v512
        %514 = vmatprep.mubr.f32.mxu0 %v367
        %515 = vmatmul.mubr.f32.gmra.mrb[0].mxu0 %v225
        %v516 = vpop.f32.mrb[0].mxu0
        %v517 = vadd.f32 0.0, %v516
        %v518 = vpop.f32.mrb[0].mxu0
        %v519 = vadd.f32 0.0, %v518
        %520 = vmatprep.mubr.f32.mxu0 %v370
        %521 = vmatmul.mubr.f32.gmra.mrb[0].mxu0 %v227
        %v522 = vpop.f32.mrb[0].mxu0
        %v523 = vadd.f32 0.0, %v522
        %v524 = vpop.f32.mrb[0].mxu0
        %v525 = vadd.f32 0.0, %v524
        %526 = vmatprep.mubr.f32.mxu0 %v373
        %527 = vmatmul.mubr.f32.gmra.mrb[0].mxu0 %v229
        %v528 = vpop.f32.mrb[0].mxu0
        %v529 = vadd.f32 0.0, %v528
        %v530 = vpop.f32.mrb[0].mxu0
        %v531 = vadd.f32 0.0, %v530
        %532 = vmatprep.mubr.f32.mxu0 %v376
        %533 = vmatmul.mubr.f32.gmra.mrb[0].mxu0 %v231
        %v534 = vpop.f32.mrb[0].mxu0
        %v535 = vadd.f32 0.0, %v534
        %v536 = vpop.f32.mrb[0].mxu0
        %v537 = vadd.f32 0.0, %v536
        %538 = vdwg.mxu0
        %539 = vmatprep.subr.mxu0 %v236
        %540 = vmatpush1.msra.mxu0 %v235
        %541 = vmatprep.subr.mxu0 %v240
        %542 = vmatpush1.msra.mxu0 %v239
        %543 = vmatprep.subr.mxu0 %v244
        %544 = vmatpush1.msra.mxu0 %v243
        %545 = vmatprep.subr.mxu0 %v248
        %546 = vmatpush1.msra.mxu0 %v247
        %547 = vmatprep.subr.mxu0 %v252
        %548 = vmatpush1.msra.mxu0 %v251
        %549 = vmatprep.subr.mxu0 %v256
        %550 = vmatpush1.msra.mxu0 %v255
        %551 = vmatprep.subr.mxu0 %v260
        %552 = vmatpush1.msra.mxu0 %v259
        %553 = vmatprep.subr.mxu0 %v264
        %554 = vmatpush1.msra.mxu0 %v263
        %555 = vmatprep.subr.mxu0 %v268
        %556 = vmatpush1.msra.mxu0 %v267
        %557 = vmatprep.subr.mxu0 %v272
        %558 = vmatpush1.msra.mxu0 %v271
        %559 = vmatprep.subr.mxu0 %v276
        %560 = vmatpush1.msra.mxu0 %v275
        %561 = vmatprep.subr.mxu0 %v280
        %562 = vmatpush1.msra.mxu0 %v279
        %563 = vmatprep.subr.mxu0 %v284
        %564 = vmatpush1.msra.mxu0 %v283
        %565 = vmatprep.subr.mxu0 %v288
        %566 = vmatpush1.msra.mxu0 %v287
        %567 = vmatprep.subr.mxu0 %v292
        %568 = vmatpush1.msra.mxu0 %v291
        %569 = vmatprep.subr.mxu0 %v296
        %570 = vmatpush1.msra.mxu0 %v295
        %571 = vmatprep.subr.mxu0 %v300
        %572 = vmatpush1.msra.mxu0 %v299
        %573 = vmatprep.subr.mxu0 %v304
        %574 = vmatpush1.msra.mxu0 %v303
        %575 = vmatprep.subr.mxu0 %v308
        %576 = vmatpush1.msra.mxu0 %v307
        %577 = vmatprep.subr.mxu0 %v312
        %578 = vmatpush1.msra.mxu0 %v311
        %579 = vmatprep.subr.mxu0 %v316
        %580 = vmatpush1.msra.mxu0 %v315
        %581 = vmatprep.subr.mxu0 %v320
        %582 = vmatpush1.msra.mxu0 %v319
        %583 = vmatprep.subr.mxu0 %v324
        %584 = vmatpush1.msra.mxu0 %v323
        %585 = vmatprep.subr.mxu0 %v328
        %586 = vmatpush1.msra.mxu0 %v327
        %587 = vmatprep.subr.mxu0 0.0
        %588 = vmatpush1.msra.mxu0 0.0
        %589 = vmatprep.subr.mxu0 0.0
        %590 = vmatpush1.msra.mxu0 0.0
        %591 = vmatprep.subr.mxu0 0.0
        %592 = vmatpush1.msra.mxu0 0.0
        %593 = vmatprep.subr.mxu0 0.0
        %594 = vmatpush1.msra.mxu0 0.0
        %595 = vmatprep.subr.mxu0 0.0
        %596 = vmatpush1.msra.mxu0 0.0
        %597 = vmatprep.subr.mxu0 0.0
        %598 = vmatpush1.msra.mxu0 0.0
        %599 = vmatprep.subr.mxu0 0.0
        %600 = vmatpush1.msra.mxu0 0.0
        %601 = vmatprep.subr.mxu0 0.0
        %602 = vmatpush1.msra.mxu0 0.0
        %603 = vmatprep.mubr.f32.mxu0 %v331
        %604 = vmatmul.mubr.f32.gmra.mrb[0].mxu0 %v201
        %v605 = vpop.f32.mrb[0].mxu0
        %v606 = vadd.f32 0.0, %v605
        %v607 = vpop.f32.mrb[0].mxu0
        %v608 = vadd.f32 0.0, %v607
        %609 = vmatprep.mubr.f32.mxu0 %v334
        %610 = vmatmul.mubr.f32.gmra.mrb[0].mxu0 %v203
        %v611 = vpop.f32.mrb[0].mxu0
        %v612 = vadd.f32 0.0, %v611
        %v613 = vpop.f32.mrb[0].mxu0
        %v614 = vadd.f32 0.0, %v613
        %615 = vmatprep.mubr.f32.mxu0 %v337
        %616 = vmatmul.mubr.f32.gmra.mrb[0].mxu0 %v205
        %v617 = vpop.f32.mrb[0].mxu0
        %v618 = vadd.f32 0.0, %v617
        %v619 = vpop.f32.mrb[0].mxu0
        %v620 = vadd.f32 0.0, %v619
        %621 = vmatprep.mubr.f32.mxu0 %v340
        %622 = vmatmul.mubr.f32.gmra.mrb[0].mxu0 %v207
        %v623 = vpop.f32.mrb[0].mxu0
        %v624 = vadd.f32 0.0, %v623
        %v625 = vpop.f32.mrb[0].mxu0
        %v626 = vadd.f32 0.0, %v625
        %627 = vmatprep.mubr.f32.mxu0 %v343
        %628 = vmatmul.mubr.f32.gmra.mrb[0].mxu0 %v209
        %v629 = vpop.f32.mrb[0].mxu0
        %v630 = vadd.f32 0.0, %v629
        %v631 = vpop.f32.mrb[0].mxu0
        %v632 = vadd.f32 0.0, %v631
        %633 = vmatprep.mubr.f32.mxu0 %v346
        %634 = vmatmul.mubr.f32.gmra.mrb[0].mxu0 %v211
        %v635 = vpop.f32.mrb[0].mxu0
        %v636 = vadd.f32 0.0, %v635
        %v637 = vpop.f32.mrb[0].mxu0
        %v638 = vadd.f32 0.0, %v637
        %639 = vmatprep.mubr.f32.mxu0 %v349
        %640 = vmatmul.mubr.f32.gmra.mrb[0].mxu0 %v213
        %v641 = vpop.f32.mrb[0].mxu0
        %v642 = vadd.f32 0.0, %v641
        %v643 = vpop.f32.mrb[0].mxu0
        %v644 = vadd.f32 0.0, %v643
        %645 = vmatprep.mubr.f32.mxu0 %v352
        %646 = vmatmul.mubr.f32.gmra.mrb[0].mxu0 %v215
        %v647 = vpop.f32.mrb[0].mxu0
        %v648 = vadd.f32 0.0, %v647
        %v649 = vpop.f32.mrb[0].mxu0
        %v650 = vadd.f32 0.0, %v649
        %651 = vmatprep.mubr.f32.mxu0 %v355
        %652 = vmatmul.mubr.f32.gmra.mrb[0].mxu0 %v217
        %v653 = vpop.f32.mrb[0].mxu0
        %v654 = vadd.f32 0.0, %v653
        %v655 = vpop.f32.mrb[0].mxu0
        %v656 = vadd.f32 0.0, %v655
        %657 = vmatprep.mubr.f32.mxu0 %v358
        %658 = vmatmul.mubr.f32.gmra.mrb[0].mxu0 %v219
        %v659 = vpop.f32.mrb[0].mxu0
        %v660 = vadd.f32 0.0, %v659
        %v661 = vpop.f32.mrb[0].mxu0
        %v662 = vadd.f32 0.0, %v661
        %663 = vmatprep.mubr.f32.mxu0 %v361
        %664 = vmatmul.mubr.f32.gmra.mrb[0].mxu0 %v221
        %v665 = vpop.f32.mrb[0].mxu0
        %v666 = vadd.f32 0.0, %v665
        %v667 = vpop.f32.mrb[0].mxu0
        %v668 = vadd.f32 0.0, %v667
        %669 = vmatprep.mubr.f32.mxu0 %v364
        %670 = vmatmul.mubr.f32.gmra.mrb[0].mxu0 %v223
        %v671 = vpop.f32.mrb[0].mxu0
        %v672 = vadd.f32 0.0, %v671
        %v673 = vpop.f32.mrb[0].mxu0
        %v674 = vadd.f32 0.0, %v673
        %675 = vmatprep.mubr.f32.mxu0 %v367
        %676 = vmatmul.mubr.f32.gmra.mrb[0].mxu0 %v225
        %v677 = vpop.f32.mrb[0].mxu0
        %v678 = vadd.f32 0.0, %v677
        %v679 = vpop.f32.mrb[0].mxu0
        %v680 = vadd.f32 0.0, %v679
        %681 = vmatprep.mubr.f32.mxu0 %v370
        %682 = vmatmul.mubr.f32.gmra.mrb[0].mxu0 %v227
        %v683 = vpop.f32.mrb[0].mxu0
        %v684 = vadd.f32 0.0, %v683
        %v685 = vpop.f32.mrb[0].mxu0
        %v686 = vadd.f32 0.0, %v685
        %687 = vmatprep.mubr.f32.mxu0 %v373
        %688 = vmatmul.mubr.f32.gmra.mrb[0].mxu0 %v229
        %v689 = vpop.f32.mrb[0].mxu0
        %v690 = vadd.f32 0.0, %v689
        %v691 = vpop.f32.mrb[0].mxu0
        %v692 = vadd.f32 0.0, %v691
        %693 = vmatprep.mubr.f32.mxu0 %v376
        %694 = vmatmul.mubr.f32.gmra.mrb[0].mxu0 %v231
        %v695 = vpop.f32.mrb[0].mxu0
        %v696 = vadd.f32 0.0, %v695
        %v697 = vpop.f32.mrb[0].mxu0
        %v698 = vadd.f32 0.0, %v697
        %699 = vdwg.mxu0
        %v700 = vmax.f32 %v445, 0.0
        %v701 = vmax.f32 %v447, 0.0
        %v702 = vmax.f32 %v606, 0.0
        %v703 = vmax.f32 %v608, 0.0
        %v704 = vmax.f32 %v451, 0.0
        %v705 = vmax.f32 %v453, 0.0
        %v706 = vmax.f32 %v612, 0.0
        %v707 = vmax.f32 %v614, 0.0
        %v708 = vmax.f32 %v457, 0.0
        %v709 = vmax.f32 %v459, 0.0
        %v710 = vmax.f32 %v618, 0.0
        %v711 = vmax.f32 %v620, 0.0
        %v712 = vmax.f32 %v463, 0.0
        %v713 = vmax.f32 %v465, 0.0
        %v714 = vmax.f32 %v624, 0.0
        %v715 = vmax.f32 %v626, 0.0
        %v716 = vmax.f32 %v469, 0.0
        %v717 = vmax.f32 %v471, 0.0
        %v718 = vmax.f32 %v630, 0.0
        %v719 = vmax.f32 %v632, 0.0
        %v720 = vmax.f32 %v475, 0.0
        %v721 = vmax.f32 %v477, 0.0
        %v722 = vmax.f32 %v636, 0.0
        %v723 = vmax.f32 %v638, 0.0
        %v724 = vmax.f32 %v481, 0.0
        %v725 = vmax.f32 %v483, 0.0
        %v726 = vmax.f32 %v642, 0.0
        %v727 = vmax.f32 %v644, 0.0
        %v728 = vmax.f32 %v487, 0.0
        %v729 = vmax.f32 %v489, 0.0
        %v730 = vmax.f32 %v648, 0.0
        %v731 = vmax.f32 %v650, 0.0
        %v732 = vmax.f32 %v493, 0.0
        %v733 = vmax.f32 %v495, 0.0
        %v734 = vmax.f32 %v654, 0.0
        %v735 = vmax.f32 %v656, 0.0
        %v736 = vmax.f32 %v499, 0.0
        %v737 = vmax.f32 %v501, 0.0
        %v738 = vmax.f32 %v660, 0.0
        %v739 = vmax.f32 %v662, 0.0
        %v740 = vmax.f32 %v505, 0.0
        %v741 = vmax.f32 %v507, 0.0
        %v742 = vmax.f32 %v666, 0.0
        %v743 = vmax.f32 %v668, 0.0
        %v744 = vmax.f32 %v511, 0.0
        %v745 = vmax.f32 %v513, 0.0
        %v746 = vmax.f32 %v672, 0.0
        %v747 = vmax.f32 %v674, 0.0
        %v748 = vmax.f32 %v517, 0.0
        %v749 = vmax.f32 %v519, 0.0
        %v750 = vmax.f32 %v678, 0.0
        %v751 = vmax.f32 %v680, 0.0
        %v752 = vmax.f32 %v523, 0.0
        %v753 = vmax.f32 %v525, 0.0
        %v754 = vmax.f32 %v684, 0.0
        %v755 = vmax.f32 %v686, 0.0
        %v756 = vmax.f32 %v529, 0.0
        %v757 = vmax.f32 %v531, 0.0
        %v758 = vmax.f32 %v690, 0.0
        %v759 = vmax.f32 %v692, 0.0
        %v760 = vmax.f32 %v535, 0.0
        %v761 = vmax.f32 %v537, 0.0
        %v762 = vmax.f32 %v696, 0.0
        %v763 = vmax.f32 %v698, 0.0
        %v764 = vld [vmem:[%s2] sm:$0xff]
        %v765 = vld [vmem:[%s2 + $0x8] sm:$0xff]
        %v766 = vld [vmem:[%s2 + $0x10] sm:$0xff]
        %v767 = vld [vmem:[%s2 + $0x18] sm:$0xff]
        %v768 = vld [vmem:[%s2 + $0x20] sm:$0xff]
        %v769 = vld [vmem:[%s2 + $0x28] sm:$0xff]
        %v770 = vld [vmem:[%s2 + $0x30] sm:$0xff]
        %v771 = vld [vmem:[%s2 + $0x38] sm:$0xff]
        %v772 = vld [vmem:[%s2 + $0x40] sm:$0xff]
        %v773 = vld [vmem:[%s2 + $0x48] sm:$0xff]
        %v774 = vld [vmem:[%s2 + $0x50] sm:$0xff]
        %v775 = vld [vmem:[%s2 + $0x58] sm:$0xff]
        %v776 = vld [vmem:[%s2 + $0x60] sm:$0xff]
        %v777 = vld [vmem:[%s2 + $0x68] sm:$0xff]
        %v778 = vld [vmem:[%s2 + $0x70] sm:$0xff]
        %v779 = vld [vmem:[%s2 + $0x78] sm:$0xff]
        %v780 = vld [vmem:[%s2 + $0x80] sm:$0xff]
        %v781 = vld [vmem:[%s2 + $0x88] sm:$0xff]
        %v782 = vld [vmem:[%s2 + $0x90] sm:$0xff]
        %v783 = vld [vmem:[%s2 + $0x98] sm:$0xff]
        %v784 = vld [vmem:[%s2 + $0xa0] sm:$0xff]
        %v785 = vld [vmem:[%s2 + $0xa8] sm:$0xff]
        %v786 = vld [vmem:[%s2 + $0xb0] sm:$0xff]
        %v787 = vld [vmem:[%s2 + $0xb8] sm:$0xff]
        %v788 = vld [vmem:[%s2 + $0xc0] sm:$0xff]
        %v789 = vld [vmem:[%s2 + $0xc8] sm:$0xff]
        %v790 = vld [vmem:[%s2 + $0xd0] sm:$0xff]
        %v791 = vld [vmem:[%s2 + $0xd8] sm:$0xff]
        %v792 = vld [vmem:[%s2 + $0xe0] sm:$0xff]
        %v793 = vld [vmem:[%s2 + $0xe8] sm:$0xff]
        %v794 = vld [vmem:[%s2 + $0xf0] sm:$0xff]
        %v795 = vld [vmem:[%s2 + $0xf8] sm:$0xff]
        %v796 = vld [vmem:[%s2 + $0x100] sm:$0xff]
        %v797 = vld [vmem:[%s2 + $0x108] sm:$0xff]
        %v798 = vld [vmem:[%s2 + $0x110] sm:$0xff]
        %v799 = vld [vmem:[%s2 + $0x118] sm:$0xff]
        %v800 = vld [vmem:[%s2 + $0x120] sm:$0xff]
        %v801 = vld [vmem:[%s2 + $0x128] sm:$0xff]
        %v802 = vld [vmem:[%s2 + $0x130] sm:$0xff]
        %v803 = vld [vmem:[%s2 + $0x138] sm:$0xff]
        %v804 = vld [vmem:[%s2 + $0x140] sm:$0xff]
        %v805 = vld [vmem:[%s2 + $0x148] sm:$0xff]
        %v806 = vld [vmem:[%s2 + $0x150] sm:$0xff]
        %v807 = vld [vmem:[%s2 + $0x158] sm:$0xff]
        %v808 = vld [vmem:[%s2 + $0x160] sm:$0xff]
        %v809 = vld [vmem:[%s2 + $0x168] sm:$0xff]
        %v810 = vld [vmem:[%s2 + $0x170] sm:$0xff]
        %v811 = vld [vmem:[%s2 + $0x178] sm:$0xff]
        %v812 = vld [vmem:[%s2 + $0x180] sm:$0xff]
        %v813 = vld [vmem:[%s2 + $0x188] sm:$0xff]
        %v814 = vld [vmem:[%s2 + $0x190] sm:$0xff]
        %v815 = vld [vmem:[%s2 + $0x198] sm:$0xff]
        %v816 = vld [vmem:[%s2 + $0x1a0] sm:$0xff]
        %v817 = vld [vmem:[%s2 + $0x1a8] sm:$0xff]
        %v818 = vld [vmem:[%s2 + $0x1b0] sm:$0xff]
        %v819 = vld [vmem:[%s2 + $0x1b8] sm:$0xff]
        %v820 = vld [vmem:[%s2 + $0x1c0] sm:$0xff]
        %v821 = vld [vmem:[%s2 + $0x1c8] sm:$0xff]
        %v822 = vld [vmem:[%s2 + $0x1d0] sm:$0xff]
        %v823 = vld [vmem:[%s2 + $0x1d8] sm:$0xff]
        %v824 = vld [vmem:[%s2 + $0x1e0] sm:$0xff]
        %v825 = vld [vmem:[%s2 + $0x1e8] sm:$0xff]
        %v826 = vld [vmem:[%s2 + $0x1f0] sm:$0xff]
        %v827 = vld [vmem:[%s2 + $0x1f8] sm:$0xff]
        %828 = vmatprep.subr.mxu0 0.0
        %829 = vmatpush1.msra.mxu0 %v764
        %830 = vmatprep.subr.mxu0 0.0
        %831 = vmatpush1.msra.mxu0 %v765
        %832 = vmatprep.subr.mxu0 0.0
        %833 = vmatpush1.msra.mxu0 %v766
        %834 = vmatprep.subr.mxu0 0.0
        %835 = vmatpush1.msra.mxu0 %v767
        %836 = vmatprep.subr.mxu0 0.0
        %837 = vmatpush1.msra.mxu0 %v768
        %838 = vmatprep.subr.mxu0 0.0
        %839 = vmatpush1.msra.mxu0 %v769
        %840 = vmatprep.subr.mxu0 0.0
        %841 = vmatpush1.msra.mxu0 %v770
        %842 = vmatprep.subr.mxu0 0.0
        %843 = vmatpush1.msra.mxu0 %v771
        %844 = vmatprep.subr.mxu0 0.0
        %845 = vmatpush1.msra.mxu0 %v772
        %846 = vmatprep.subr.mxu0 0.0
        %847 = vmatpush1.msra.mxu0 %v773
        %848 = vmatprep.subr.mxu0 0.0
        %849 = vmatpush1.msra.mxu0 %v774
        %850 = vmatprep.subr.mxu0 0.0
        %851 = vmatpush1.msra.mxu0 %v775
        %852 = vmatprep.subr.mxu0 0.0
        %853 = vmatpush1.msra.mxu0 %v776
        %854 = vmatprep.subr.mxu0 0.0
        %855 = vmatpush1.msra.mxu0 %v777
        %856 = vmatprep.subr.mxu0 0.0
        %857 = vmatpush1.msra.mxu0 %v778
        %858 = vmatprep.subr.mxu0 0.0
        %859 = vmatpush1.msra.mxu0 %v779
        %860 = vmatprep.subr.mxu0 0.0
        %861 = vmatpush1.msra.mxu0 %v780
        %862 = vmatprep.subr.mxu0 0.0
        %863 = vmatpush1.msra.mxu0 %v781
        %864 = vmatprep.subr.mxu0 0.0
        %865 = vmatpush1.msra.mxu0 %v782
        %866 = vmatprep.subr.mxu0 0.0
        %867 = vmatpush1.msra.mxu0 %v783
        %868 = vmatprep.subr.mxu0 0.0
        %869 = vmatpush1.msra.mxu0 %v784
        %870 = vmatprep.subr.mxu0 0.0
        %871 = vmatpush1.msra.mxu0 %v785
        %872 = vmatprep.subr.mxu0 0.0
        %873 = vmatpush1.msra.mxu0 %v786
        %874 = vmatprep.subr.mxu0 0.0
        %875 = vmatpush1.msra.mxu0 %v787
        %876 = vmatprep.subr.mxu0 0.0
        %877 = vmatpush1.msra.mxu0 %v788
        %878 = vmatprep.subr.mxu0 0.0
        %879 = vmatpush1.msra.mxu0 %v789
        %880 = vmatprep.subr.mxu0 0.0
        %881 = vmatpush1.msra.mxu0 %v790
        %882 = vmatprep.subr.mxu0 0.0
        %883 = vmatpush1.msra.mxu0 %v791
        %884 = vmatprep.subr.mxu0 0.0
        %885 = vmatpush1.msra.mxu0 %v792
        %886 = vmatprep.subr.mxu0 0.0
        %887 = vmatpush1.msra.mxu0 %v793
        %888 = vmatprep.subr.mxu0 0.0
        %889 = vmatpush1.msra.mxu0 %v794
        %890 = vmatprep.subr.mxu0 0.0
        %891 = vmatpush1.msra.mxu0 %v795
        %892 = vmatprep.mubr.f32.mxu0 %v701
        %893 = vmatmul.mubr.f32.gmra.mrb[0].mxu0 %v700
        %v894 = vpop.f32.mrb[0].mxu0
        %v895 = vadd.f32 0.0, %v894
        %v896 = vpop.f32.mrb[0].mxu0
        %897 = vmatprep.mubr.f32.mxu0 %v705
        %898 = vmatmul.mubr.f32.gmra.mrb[0].mxu0 %v704
        %v899 = vpop.f32.mrb[0].mxu0
        %v900 = vadd.f32 0.0, %v899
        %v901 = vpop.f32.mrb[0].mxu0
        %902 = vmatprep.mubr.f32.mxu0 %v709
        %903 = vmatmul.mubr.f32.gmra.mrb[0].mxu0 %v708
        %v904 = vpop.f32.mrb[0].mxu0
        %v905 = vadd.f32 0.0, %v904
        %v906 = vpop.f32.mrb[0].mxu0
        %907 = vmatprep.mubr.f32.mxu0 %v713
        %908 = vmatmul.mubr.f32.gmra.mrb[0].mxu0 %v712
        %v909 = vpop.f32.mrb[0].mxu0
        %v910 = vadd.f32 0.0, %v909
        %v911 = vpop.f32.mrb[0].mxu0
        %912 = vmatprep.mubr.f32.mxu0 %v717
        %913 = vmatmul.mubr.f32.gmra.mrb[0].mxu0 %v716
        %v914 = vpop.f32.mrb[0].mxu0
        %v915 = vadd.f32 0.0, %v914
        %v916 = vpop.f32.mrb[0].mxu0
        %917 = vmatprep.mubr.f32.mxu0 %v721
        %918 = vmatmul.mubr.f32.gmra.mrb[0].mxu0 %v720
        %v919 = vpop.f32.mrb[0].mxu0
        %v920 = vadd.f32 0.0, %v919
        %v921 = vpop.f32.mrb[0].mxu0
        %922 = vmatprep.mubr.f32.mxu0 %v725
        %923 = vmatmul.mubr.f32.gmra.mrb[0].mxu0 %v724
        %v924 = vpop.f32.mrb[0].mxu0
        %v925 = vadd.f32 0.0, %v924
        %v926 = vpop.f32.mrb[0].mxu0
        %927 = vmatprep.mubr.f32.mxu0 %v729
        %928 = vmatmul.mubr.f32.gmra.mrb[0].mxu0 %v728
        %v929 = vpop.f32.mrb[0].mxu0
        %v930 = vadd.f32 0.0, %v929
        %v931 = vpop.f32.mrb[0].mxu0
        %932 = vmatprep.mubr.f32.mxu0 %v733
        %933 = vmatmul.mubr.f32.gmra.mrb[0].mxu0 %v732
        %v934 = vpop.f32.mrb[0].mxu0
        %v935 = vadd.f32 0.0, %v934
        %v936 = vpop.f32.mrb[0].mxu0
        %937 = vmatprep.mubr.f32.mxu0 %v737
        %938 = vmatmul.mubr.f32.gmra.mrb[0].mxu0 %v736
        %v939 = vpop.f32.mrb[0].mxu0
        %v940 = vadd.f32 0.0, %v939
        %v941 = vpop.f32.mrb[0].mxu0
        %942 = vmatprep.mubr.f32.mxu0 %v741
        %943 = vmatmul.mubr.f32.gmra.mrb[0].mxu0 %v740
        %v944 = vpop.f32.mrb[0].mxu0
        %v945 = vadd.f32 0.0, %v944
        %v946 = vpop.f32.mrb[0].mxu0
        %947 = vmatprep.mubr.f32.mxu0 %v745
        %948 = vmatmul.mubr.f32.gmra.mrb[0].mxu0 %v744
        %v949 = vpop.f32.mrb[0].mxu0
        %v950 = vadd.f32 0.0, %v949
        %v951 = vpop.f32.mrb[0].mxu0
        %952 = vmatprep.mubr.f32.mxu0 %v749
        %953 = vmatmul.mubr.f32.gmra.mrb[0].mxu0 %v748
        %v954 = vpop.f32.mrb[0].mxu0
        %v955 = vadd.f32 0.0, %v954
        %v956 = vpop.f32.mrb[0].mxu0
        %957 = vmatprep.mubr.f32.mxu0 %v753
        %958 = vmatmul.mubr.f32.gmra.mrb[0].mxu0 %v752
        %v959 = vpop.f32.mrb[0].mxu0
        %v960 = vadd.f32 0.0, %v959
        %v961 = vpop.f32.mrb[0].mxu0
        %962 = vmatprep.mubr.f32.mxu0 %v757
        %963 = vmatmul.mubr.f32.gmra.mrb[0].mxu0 %v756
        %v964 = vpop.f32.mrb[0].mxu0
        %v965 = vadd.f32 0.0, %v964
        %v966 = vpop.f32.mrb[0].mxu0
        %967 = vmatprep.mubr.f32.mxu0 %v761
        %968 = vmatmul.mubr.f32.gmra.mrb[0].mxu0 %v760
        %v969 = vpop.f32.mrb[0].mxu0
        %v970 = vadd.f32 0.0, %v969
        %v971 = vpop.f32.mrb[0].mxu0
        %972 = vdwg.mxu0
        %973 = vmatprep.subr.mxu0 0.0
        %974 = vmatpush1.msra.mxu0 %v796
        %975 = vmatprep.subr.mxu0 0.0
        %976 = vmatpush1.msra.mxu0 %v797
        %977 = vmatprep.subr.mxu0 0.0
        %978 = vmatpush1.msra.mxu0 %v798
        %979 = vmatprep.subr.mxu0 0.0
        %980 = vmatpush1.msra.mxu0 %v799
        %981 = vmatprep.subr.mxu0 0.0
        %982 = vmatpush1.msra.mxu0 %v800
        %983 = vmatprep.subr.mxu0 0.0
        %984 = vmatpush1.msra.mxu0 %v801
        %985 = vmatprep.subr.mxu0 0.0
        %986 = vmatpush1.msra.mxu0 %v802
        %987 = vmatprep.subr.mxu0 0.0
        %988 = vmatpush1.msra.mxu0 %v803
        %989 = vmatprep.subr.mxu0 0.0
        %990 = vmatpush1.msra.mxu0 %v804
        %991 = vmatprep.subr.mxu0 0.0
        %992 = vmatpush1.msra.mxu0 %v805
        %993 = vmatprep.subr.mxu0 0.0
        %994 = vmatpush1.msra.mxu0 %v806
        %995 = vmatprep.subr.mxu0 0.0
        %996 = vmatpush1.msra.mxu0 %v807
        %997 = vmatprep.subr.mxu0 0.0
        %998 = vmatpush1.msra.mxu0 %v808
        %999 = vmatprep.subr.mxu0 0.0
        %1000 = vmatpush1.msra.mxu0 %v809
        %1001 = vmatprep.subr.mxu0 0.0
        %1002 = vmatpush1.msra.mxu0 %v810
        %1003 = vmatprep.subr.mxu0 0.0
        %1004 = vmatpush1.msra.mxu0 %v811
        %1005 = vmatprep.subr.mxu0 0.0
        %1006 = vmatpush1.msra.mxu0 %v812
        %1007 = vmatprep.subr.mxu0 0.0
        %1008 = vmatpush1.msra.mxu0 %v813
        %1009 = vmatprep.subr.mxu0 0.0
        %1010 = vmatpush1.msra.mxu0 %v814
        %1011 = vmatprep.subr.mxu0 0.0
        %1012 = vmatpush1.msra.mxu0 %v815
        %1013 = vmatprep.subr.mxu0 0.0
        %1014 = vmatpush1.msra.mxu0 %v816
        %1015 = vmatprep.subr.mxu0 0.0
        %1016 = vmatpush1.msra.mxu0 %v817
        %1017 = vmatprep.subr.mxu0 0.0
        %1018 = vmatpush1.msra.mxu0 %v818
        %1019 = vmatprep.subr.mxu0 0.0
        %1020 = vmatpush1.msra.mxu0 %v819
        %1021 = vmatprep.subr.mxu0 0.0
        %1022 = vmatpush1.msra.mxu0 %v820
        %1023 = vmatprep.subr.mxu0 0.0
        %1024 = vmatpush1.msra.mxu0 %v821
        %1025 = vmatprep.subr.mxu0 0.0
        %1026 = vmatpush1.msra.mxu0 %v822
        %1027 = vmatprep.subr.mxu0 0.0
        %1028 = vmatpush1.msra.mxu0 %v823
        %1029 = vmatprep.subr.mxu0 0.0
        %1030 = vmatpush1.msra.mxu0 %v824
        %1031 = vmatprep.subr.mxu0 0.0
        %1032 = vmatpush1.msra.mxu0 %v825
        %1033 = vmatprep.subr.mxu0 0.0
        %1034 = vmatpush1.msra.mxu0 %v826
        %1035 = vmatprep.subr.mxu0 0.0
        %1036 = vmatpush1.msra.mxu0 %v827
        %1037 = vmatprep.mubr.f32.mxu0 %v703
        %1038 = vmatmul.mubr.f32.gmra.mrb[0].mxu0 %v702
        %v1039 = vpop.f32.mrb[0].mxu0
        %v1040 = vadd.f32 %v895, %v1039
        %v1041 = vpop.f32.mrb[0].mxu0
        %1042 = vmatprep.mubr.f32.mxu0 %v707
        %1043 = vmatmul.mubr.f32.gmra.mrb[0].mxu0 %v706
        %v1044 = vpop.f32.mrb[0].mxu0
        %v1045 = vadd.f32 %v900, %v1044
        %v1046 = vpop.f32.mrb[0].mxu0
        %1047 = vmatprep.mubr.f32.mxu0 %v711
        %1048 = vmatmul.mubr.f32.gmra.mrb[0].mxu0 %v710
        %v1049 = vpop.f32.mrb[0].mxu0
        %v1050 = vadd.f32 %v905, %v1049
        %v1051 = vpop.f32.mrb[0].mxu0
        %1052 = vmatprep.mubr.f32.mxu0 %v715
        %1053 = vmatmul.mubr.f32.gmra.mrb[0].mxu0 %v714
        %v1054 = vpop.f32.mrb[0].mxu0
        %v1055 = vadd.f32 %v910, %v1054
        %v1056 = vpop.f32.mrb[0].mxu0
        %1057 = vmatprep.mubr.f32.mxu0 %v719
        %1058 = vmatmul.mubr.f32.gmra.mrb[0].mxu0 %v718
        %v1059 = vpop.f32.mrb[0].mxu0
        %v1060 = vadd.f32 %v915, %v1059
        %v1061 = vpop.f32.mrb[0].mxu0
        %1062 = vmatprep.mubr.f32.mxu0 %v723
        %1063 = vmatmul.mubr.f32.gmra.mrb[0].mxu0 %v722
        %v1064 = vpop.f32.mrb[0].mxu0
        %v1065 = vadd.f32 %v920, %v1064
        %v1066 = vpop.f32.mrb[0].mxu0
        %1067 = vmatprep.mubr.f32.mxu0 %v727
        %1068 = vmatmul.mubr.f32.gmra.mrb[0].mxu0 %v726
        %v1069 = vpop.f32.mrb[0].mxu0
        %v1070 = vadd.f32 %v925, %v1069
        %v1071 = vpop.f32.mrb[0].mxu0
        %1072 = vmatprep.mubr.f32.mxu0 %v731
        %1073 = vmatmul.mubr.f32.gmra.mrb[0].mxu0 %v730
        %v1074 = vpop.f32.mrb[0].mxu0
        %v1075 = vadd.f32 %v930, %v1074
        %v1076 = vpop.f32.mrb[0].mxu0
        %1077 = vmatprep.mubr.f32.mxu0 %v735
        %1078 = vmatmul.mubr.f32.gmra.mrb[0].mxu0 %v734
        %v1079 = vpop.f32.mrb[0].mxu0
        %v1080 = vadd.f32 %v935, %v1079
        %v1081 = vpop.f32.mrb[0].mxu0
        %1082 = vmatprep.mubr.f32.mxu0 %v739
        %1083 = vmatmul.mubr.f32.gmra.mrb[0].mxu0 %v738
        %v1084 = vpop.f32.mrb[0].mxu0
        %v1085 = vadd.f32 %v940, %v1084
        %v1086 = vpop.f32.mrb[0].mxu0
        %1087 = vmatprep.mubr.f32.mxu0 %v743
        %1088 = vmatmul.mubr.f32.gmra.mrb[0].mxu0 %v742
        %v1089 = vpop.f32.mrb[0].mxu0
        %v1090 = vadd.f32 %v945, %v1089
        %v1091 = vpop.f32.mrb[0].mxu0
        %1092 = vmatprep.mubr.f32.mxu0 %v747
        %1093 = vmatmul.mubr.f32.gmra.mrb[0].mxu0 %v746
        %v1094 = vpop.f32.mrb[0].mxu0
        %v1095 = vadd.f32 %v950, %v1094
        %v1096 = vpop.f32.mrb[0].mxu0
        %1097 = vmatprep.mubr.f32.mxu0 %v751
        %1098 = vmatmul.mubr.f32.gmra.mrb[0].mxu0 %v750
        %v1099 = vpop.f32.mrb[0].mxu0
        %v1100 = vadd.f32 %v955, %v1099
        %v1101 = vpop.f32.mrb[0].mxu0
        %1102 = vmatprep.mubr.f32.mxu0 %v755
        %1103 = vmatmul.mubr.f32.gmra.mrb[0].mxu0 %v754
        %v1104 = vpop.f32.mrb[0].mxu0
        %v1105 = vadd.f32 %v960, %v1104
        %v1106 = vpop.f32.mrb[0].mxu0
        %1107 = vmatprep.mubr.f32.mxu0 %v759
        %1108 = vmatmul.mubr.f32.gmra.mrb[0].mxu0 %v758
        %v1109 = vpop.f32.mrb[0].mxu0
        %v1110 = vadd.f32 %v965, %v1109
        %v1111 = vpop.f32.mrb[0].mxu0
        %1112 = vmatprep.mubr.f32.mxu0 %v763
        %1113 = vmatmul.mubr.f32.gmra.mrb[0].mxu0 %v762
        %v1114 = vpop.f32.mrb[0].mxu0
        %v1115 = vadd.f32 %v970, %v1114
        %v1116 = vpop.f32.mrb[0].mxu0
        %1117 = vdwg.mxu0
        %v1118 = vadd.f32 %v1040, %v1045
        %v1119 = vrot.slane %v1118, 4
        %v1120 = vadd.f32 %v1118, %v1119
        %v1121 = vrot.slane %v1120, 2
        %v1122 = vadd.f32 %v1120, %v1121
        %v1123 = vrot.slane %v1122, 1
        %v1124 = vadd.f32 %v1122, %v1123
        %v1125 = vadd.f32 %v1050, %v1055
        %v1126 = vrot.slane %v1125, 4
        %v1127 = vadd.f32 %v1125, %v1126
        %v1128 = vrot.slane %v1127, 2
        %v1129 = vadd.f32 %v1127, %v1128
        %v1130 = vrot.slane %v1129, 1
        %v1131 = vadd.f32 %v1129, %v1130
        %v1132 = vadd.f32 %v1060, %v1065
        %v1133 = vrot.slane %v1132, 4
        %v1134 = vadd.f32 %v1132, %v1133
        %v1135 = vrot.slane %v1134, 2
        %v1136 = vadd.f32 %v1134, %v1135
        %v1137 = vrot.slane %v1136, 1
        %v1138 = vadd.f32 %v1136, %v1137
        %v1139 = vadd.f32 %v1070, %v1075
        %v1140 = vrot.slane %v1139, 4
        %v1141 = vadd.f32 %v1139, %v1140
        %v1142 = vrot.slane %v1141, 2
        %v1143 = vadd.f32 %v1141, %v1142
        %v1144 = vrot.slane %v1143, 1
        %v1145 = vadd.f32 %v1143, %v1144
        %v1146 = vadd.f32 %v1080, %v1085
        %v1147 = vrot.slane %v1146, 4
        %v1148 = vadd.f32 %v1146, %v1147
        %v1149 = vrot.slane %v1148, 2
        %v1150 = vadd.f32 %v1148, %v1149
        %v1151 = vrot.slane %v1150, 1
        %v1152 = vadd.f32 %v1150, %v1151
        %v1153 = vadd.f32 %v1090, %v1095
        %v1154 = vrot.slane %v1153, 4
        %v1155 = vadd.f32 %v1153, %v1154
        %v1156 = vrot.slane %v1155, 2
        %v1157 = vadd.f32 %v1155, %v1156
        %v1158 = vrot.slane %v1157, 1
        %v1159 = vadd.f32 %v1157, %v1158
        %v1160 = vadd.f32 %v1100, %v1105
        %v1161 = vrot.slane %v1160, 4
        %v1162 = vadd.f32 %v1160, %v1161
        %v1163 = vrot.slane %v1162, 2
        %v1164 = vadd.f32 %v1162, %v1163
        %v1165 = vrot.slane %v1164, 1
        %v1166 = vadd.f32 %v1164, %v1165
        %v1167 = vadd.f32 %v1110, %v1115
        %v1168 = vrot.slane %v1167, 4
        %v1169 = vadd.f32 %v1167, %v1168
        %v1170 = vrot.slane %v1169, 2
        %v1171 = vadd.f32 %v1169, %v1170
        %v1172 = vrot.slane %v1171, 1
        %v1173 = vadd.f32 %v1171, %v1172
        %v1174 = vld [vmem:[%s3] sm:$0x1]
        %v1176 = vlaneseq
        %v1177 = vshrl.u32 %v1176, 7
        %v1178 = vsub.s32 0, %v1177
        %v1179 = vrot.slane %v1174, %v1178
        %v1181 = vadd.f32 %v1124, %v1179
        %v1182 = vadd.f32 %v1131, %v1179
        %v1183 = vadd.f32 %v1138, %v1179
        %v1184 = vadd.f32 %v1145, %v1179
        %v1185 = vadd.f32 %v1152, %v1179
        %v1186 = vadd.f32 %v1159, %v1179
        %v1187 = vadd.f32 %v1166, %v1179
        %v1188 = vadd.f32 %v1173, %v1179
        %v1197 = vrot.slane %v1182, 7
        %vm1198 = vcmask 1041409
        %v1199 = vsel %vm1198, %v1197, %v1181
        %v1200 = vrot.slane %v1183, 6
        %vm1201 = vcmask 1042434
        %v1202 = vsel %vm1201, %v1200, %v1199
        %v1203 = vrot.slane %v1184, 5
        %vm1204 = vcmask 1043459
        %v1205 = vsel %vm1204, %v1203, %v1202
        %v1206 = vrot.slane %v1185, 4
        %vm1207 = vcmask 1044484
        %v1208 = vsel %vm1207, %v1206, %v1205
        %v1209 = vrot.slane %v1186, 3
        %vm1210 = vcmask 1045509
        %v1211 = vsel %vm1210, %v1209, %v1208
        %v1212 = vrot.slane %v1187, 2
        %vm1213 = vcmask 1046534
        %v1214 = vsel %vm1213, %v1212, %v1211
        %v1215 = vrot.slane %v1188, 1
        %vm1216 = vcmask 1047559
        %v1217 = vsel %vm1216, %v1215, %v1214
        %1219 = vst [vmem:[%s193] sm:$0xff] %v1217
        %s1220 = sand.u32 %s115, 1
        %s1221 = scalar_lea.sflag [#allocation3], %s1220
        %s1222 = sand.u32 %s115, 1
        %s1223 = smul.addr %s1222, 8
        %s1224 = scalar_lea.vmem [#allocation2], %s1223
        // Predicated region
        $region37: #{siamese_encoder_forward.1} parent=35 // pred_check
          %p1225 = pneg %p125
        $region38: #{siamese_encoder_forward.1} parent=35 // pred_check_branch
          %1227 = sbr.rel (%p1225) target = $region40
        $region39: #{siamese_encoder_forward.1} parent=35 // pred_region
          %s1229 = ssub.s32 128, 128
          %1230 = vsyncadd %s1221, %s1229
          %s1231 = smul.addr %s18, 128
          %s1232 = scalar_lea.hbm %s4, %s1231
          %s1234 = sshll.u32 %s1224, 4
          %s1235 = int_to_ptr.vmem [resolvable:$true] %s1234
          %1237 = dma.vmem_to_hbm [thread:$0]  %s1235, 128, %s1232, %s1221
        $region40: #{siamese_encoder_forward.1} parent=35 // pred_fallthru
          _
      $region36: #{siamese_encoder_forward.1} parent=5 // pred_fallthru
        _
      %p1238 = scmp.le.s32.totalorder 2, %s13
      // Predicated region
      $region41: #{siamese_encoder_forward.1} parent=5 // pred_check
        %p1239 = pneg %p1238
      $region42: #{siamese_encoder_forward.1} parent=5 // pred_check_branch
        %1241 = sbr.rel (%p1239) target = $region44
      $region43: #{siamese_encoder_forward.1} parent=5 // pred_region
        %s1242 = ssub.s32 %s13, 2
        // Predicated region
        $region45: #{siamese_encoder_forward.1} parent=43 // pred_check
          %p1243 = pneg %p131
        $region46: #{siamese_encoder_forward.1} parent=43 // pred_check_branch
          %1245 = sbr.rel (%p1243) target = $region48
        $region47: #{siamese_encoder_forward.1} parent=43 // pred_region
          %s1246 = sand.u32 %s116, 1
          %s1247 = scalar_lea.sflag [#allocation3], %s1246
          %s1248 = sand.u32 %s116, 1
          %s1249 = smul.addr %s1248, 8
          %s1250 = scalar_lea.vmem [#allocation2], %s1249
          %1251 = dma.done %s1247, 128
        $region48: #{siamese_encoder_forward.1} parent=43 // pred_fallthru
          _
      $region44: #{siamese_encoder_forward.1} parent=5 // pred_fallthru
        _
    $region6: #{siamese_encoder_forward.1} parent=1 // loop_footer
      %s17 = sadd.s32 1, %s13
    $region7: #{siamese_encoder_forward.1} parent=1 // loop_footer_branch
      %12 = sbr.rel target = $region3
    $region8: #{siamese_encoder_forward.1} parent=1 // loop_exit
      _
    %1252 = vsyncpa [#allocation3], 1
    %s1253 = scalar_lea.sflag [#allocation3], 1
    %1254 = vsyncpa %s1253, 1

</llo_original>
